<compile_context>
chip_gen: v5e
topology: v5e:2x2
jax: 0.10.0
libtpu: 0.0.40
codegen_flags: <defaults>
</compile_context>

<pallas_src>
import math

import jax
import jax.numpy as jnp
from jax.experimental import pallas as pl
from jax.experimental.pallas import tpu as pltpu

_LANE = 128
_SUBLANE = 8


def _round_up(n, m):
    return ((n + m - 1) // m) * m


# --------------------------------------------------------------------------
# Kernel: 4 dense layers (in -> 256 -> 128 -> 128 -> 128 padded) fused.
# Matmuls run in bf16 on the MXU with f32 accumulation; elementwise in f32.
# --------------------------------------------------------------------------
def dnn3_cord_kernel(x_ref,
                     w1_ref, b1_ref,
                     w2_ref, b2_ref,
                     w3_ref, b3_ref,
                     w4_ref, b4_ref,
                     o_ref):
    # x arrives as f32 straight from HBM; cast to bf16 in-kernel (VPU op hidden
    # under DMA/MXU) instead of an extra wrapper-side HBM pass.
    x = x_ref[...].astype(jnp.bfloat16)                          # (TILE_B, IN)

    h = jnp.dot(x, w1_ref[...], preferred_element_type=jnp.float32) + b1_ref[...]
    h = jnp.maximum(h, 0.0).astype(jnp.bfloat16)                 # ReLU

    h = jnp.dot(h, w2_ref[...], preferred_element_type=jnp.float32) + b2_ref[...]
    h = jnp.maximum(h, 0.0).astype(jnp.bfloat16)                 # ReLU

    h = jnp.dot(h, w3_ref[...], preferred_element_type=jnp.float32) + b3_ref[...]
    h = jnp.maximum(h, 0.0).astype(jnp.bfloat16)                 # ReLU

    z = jnp.dot(h, w4_ref[...], preferred_element_type=jnp.float32) + b4_ref[...]
    # Sigmoid: exp on the EUP, reciprocal on the EUP (vrcp) -> no VALU divide.
    sig = pl.reciprocal(1.0 + jnp.exp(-z), approx=True)
    o_ref[...] = sig.astype(o_ref.dtype)                         # bf16 writeback


# --------------------------------------------------------------------------
# Host-side parameter prep: zero-pad output dims to multiples of 128, chain the
# input dims accordingly, cast weights to bf16 (MXU-native), keep biases f32.
# Total weights are ~150 KiB, so this one-time pad/cast is free.
# NOTE: prev_out_pad starts at the *unpadded* in_channels because the x
# BlockSpec's last dim is the full, unpadded in_dim.
# --------------------------------------------------------------------------
def pad_params(params):
    padded = []
    prev_out_pad = params[0][0].shape[0]          # first-layer input dim (unpadded)
    for w, b in params:
        fan_in, fan_out = w.shape
        in_pad = prev_out_pad
        out_pad = _round_up(fan_out, _LANE)
        w_p = jnp.zeros((in_pad, out_pad), jnp.float32).at[:fan_in, :fan_out].set(w)
        b_p = jnp.zeros((1, out_pad), jnp.float32).at[:, :fan_out].set(
            b.reshape(1, fan_out))
        padded.append((w_p.astype(jnp.bfloat16), b_p))
        prev_out_pad = out_pad
    return padded


def _pick_tile_b(B, tile_b):
    # At least two grid steps when the batch allows it (v7x has 2 TensorCores
    # and shards "parallel" grid axes across them); multiple of 8 sublanes.
    if B > _SUBLANE:
        two_way = _round_up(-(-B // 2), _SUBLANE)
    else:
        two_way = _SUBLANE
    tb = max(_SUBLANE, min(tile_b, two_way))
    return _round_up(tb, _SUBLANE)


# --------------------------------------------------------------------------
# Wrapper: batch-tiled pallas_call, resident weights, lane-dense bf16 padded
# output, slice back to the true (B, 2) shape.  Returns [z, x] like PyTorch.
# --------------------------------------------------------------------------
def dnn3_cord_forward(x, params, *, tile_b=2048):
    (w1, b1), (w2, b2), (w3, b3), (w4, b4) = pad_params(params)

    B, in_dim = x.shape
    out_true = params[-1][0].shape[1]             # 2
    out_pad = w4.shape[1]                         # 128

    tile_b = _pick_tile_b(B, tile_b)
    grid = (pl.cdiv(B, tile_b),)                  # ragged last block handled by Pallas
    rows_pad = grid[0] * tile_b

    def const_map(i):                             # weights/biases: DMA once, resident
        return (0, 0)

    weight_specs = []
    for w, b in ((w1, b1), (w2, b2), (w3, b3), (w4, b4)):
        weight_specs.append(pl.BlockSpec(w.shape, const_map))
        weight_specs.append(pl.BlockSpec(b.shape, const_map))

    flops = 2 * rows_pad * (in_dim * w1.shape[1]
                            + w2.shape[0] * w2.shape[1]
                            + w3.shape[0] * w3.shape[1]
                            + w4.shape[0] * w4.shape[1])
    bytes_accessed = (x.size * 4 + rows_pad * out_pad * 2
                      + sum(w.size * 2 + b.size * 4
                            for w, b in ((w1, b1), (w2, b2), (w3, b3), (w4, b4))))
    cost = pl.CostEstimate(flops=flops,
                           transcendentals=rows_pad * out_pad,
                           bytes_accessed=bytes_accessed)

    z_pad = pl.pallas_call(
        dnn3_cord_kernel,
        out_shape=jax.ShapeDtypeStruct((B, out_pad), jnp.bfloat16),
        grid=grid,
        in_specs=[pl.BlockSpec((tile_b, in_dim), lambda i: (i, 0))] + weight_specs,
        out_specs=pl.BlockSpec((tile_b, out_pad), lambda i: (i, 0)),
        compiler_params=pltpu.CompilerParams(
            dimension_semantics=("parallel",),
            vmem_limit_bytes=32 * 1024 * 1024),   # one code path across v5e/v6e/v7x
        cost_estimate=cost,
    )(x, w1, b1, w2, b2, w3, b3, w4, b4)

    # Final narrow slice back to the module's (B, 2) f32 contract.  Consumers
    # that can index columns 0:2 of the padded bf16 output directly should do
    # so to skip this extra output-sized pass.
    z = z_pad[:, :out_true].astype(jnp.float32)
    return [z, x]


# --------------------------------------------------------------------------
# Deterministic PyTorch-style init: U(-1/sqrt(fan_in), 1/sqrt(fan_in)).
# Weight stored as (fan_in, fan_out) (transposed vs. nn.Linear).
# --------------------------------------------------------------------------
def init_linear_params(key, fan_in, fan_out):
    kw, kb = jax.random.split(key)
    bound = 1.0 / math.sqrt(fan_in)
    w = jax.random.uniform(kw, (fan_in, fan_out), jnp.float32, -bound, bound)
    b = jax.random.uniform(kb, (1, fan_out), jnp.float32, -bound, bound)
    return w, b


def make_params(key, in_channels, hidden_dims=None):
    if hidden_dims is None:
        hidden_dims = [200, 100, 50]
    dims = [in_channels] + hidden_dims + [2]
    keys = jax.random.split(key, len(dims) - 1)
    return [init_linear_params(k, dims[i], dims[i + 1])
            for i, k in enumerate(keys)]


# Pure-JAX reference of the original module's forward (f32 throughout).
def ref_forward(x, params):
    h = x
    last = len(params) - 1
    for i, (w, b) in enumerate(params):
        h = h @ w + b
        h = jnp.maximum(h, 0.0) if i < last else jax.nn.sigmoid(h)
    return h


# TODO(synk): loss_function (MSE training loss) is a host-side utility, not part
# of the forward pass, so it is intentionally left out of the kernel.

if __name__ == "__main__":
    key = jax.random.PRNGKey(0)
    k_x, k_p, k_x2 = jax.random.split(key, 3)

    in_channels = 32
    hidden_dims = [200, 100, 50]
    params = make_params(k_p, in_channels, hidden_dims)

    # Small demo batch (single grid step).
    batch = 8
    x = jax.random.normal(k_x, (batch, in_channels), dtype=jnp.float32)
    z, x_out = dnn3_cord_forward(x, params)
    jax.block_until_ready(z)
    assert z.shape == (batch, 2)
    z_ref = ref_forward(x, params)
    assert bool(jnp.allclose(z, z_ref, atol=2e-2, rtol=2e-2)), "mismatch (B=8)"

    # A batch that is not a multiple of the tile: exercises the 2-step grid and
    # the ragged (Pallas-padded) last block.
    batch2 = 300
    x2 = jax.random.normal(k_x2, (batch2, in_channels), dtype=jnp.float32)
    z2, _ = dnn3_cord_forward(x2, params)
    jax.block_until_ready(z2)
    assert z2.shape == (batch2, 2)
    z2_ref = ref_forward(x2, params)
    assert bool(jnp.allclose(z2, z2_ref, atol=2e-2, rtol=2e-2)), "mismatch (B=300)"

    print("KERNEL_OK")
</pallas_src>

<mosaic_0001>
module attributes {stable_mosaic.version = 11 : i64} {
  func.func @dnn3_cord_kernel(%arg0: i32, %arg1: memref<8x32xf32, #tpu.memory_space<vmem>>, %arg2: memref<32x256xbf16, #tpu.memory_space<vmem>>, %arg3: memref<1x256xf32, #tpu.memory_space<vmem>>, %arg4: memref<256x128xbf16, #tpu.memory_space<vmem>>, %arg5: memref<1x128xf32, #tpu.memory_space<vmem>>, %arg6: memref<128x128xbf16, #tpu.memory_space<vmem>>, %arg7: memref<1x128xf32, #tpu.memory_space<vmem>>, %arg8: memref<128x128xbf16, #tpu.memory_space<vmem>>, %arg9: memref<1x128xf32, #tpu.memory_space<vmem>>, %arg10: memref<8x128xbf16, #tpu.memory_space<vmem>>) attributes {dimension_semantics = [#tpu.dimension_semantics<parallel>], iteration_bounds = array<i64: 1>, scalar_prefetch = 0 : i64, scratch_operands = 0 : i64, tpu.core_type = #tpu.core_type<tc>, window_params = [{transform_indices = @transform_0, window_bounds = array<i64: 8, 32>}, {pipeline_mode = #tpu.pipeline_mode<synchronous>, transform_indices = @transform_1, window_bounds = array<i64: 32, 256>}, {pipeline_mode = #tpu.pipeline_mode<synchronous>, transform_indices = @transform_2, window_bounds = array<i64: 1, 256>}, {pipeline_mode = #tpu.pipeline_mode<synchronous>, transform_indices = @transform_3, window_bounds = array<i64: 256, 128>}, {pipeline_mode = #tpu.pipeline_mode<synchronous>, transform_indices = @transform_4, window_bounds = array<i64: 1, 128>}, {pipeline_mode = #tpu.pipeline_mode<synchronous>, transform_indices = @transform_5, window_bounds = array<i64: 128, 128>}, {pipeline_mode = #tpu.pipeline_mode<synchronous>, transform_indices = @transform_6, window_bounds = array<i64: 1, 128>}, {pipeline_mode = #tpu.pipeline_mode<synchronous>, transform_indices = @transform_7, window_bounds = array<i64: 128, 128>}, {pipeline_mode = #tpu.pipeline_mode<synchronous>, transform_indices = @transform_8, window_bounds = array<i64: 1, 128>}, {transform_indices = @transform_9, window_bounds = array<i64: 8, 128>}]} {
    %c0 = arith.constant 0 : index
    %c0_0 = arith.constant 0 : index
    %0 = vector.load %arg1[%c0, %c0_0] : memref<8x32xf32, #tpu.memory_space<vmem>>, vector<8x32xf32>
    %1 = arith.truncf %0 : vector<8x32xf32> to vector<8x32xbf16>
    %c0_1 = arith.constant 0 : index
    %c0_2 = arith.constant 0 : index
    %2 = vector.load %arg2[%c0_1, %c0_2] : memref<32x256xbf16, #tpu.memory_space<vmem>>, vector<32x256xbf16>
    %cst = arith.constant dense<0.000000e+00> : vector<8x256xf32>
    %3 = tpu.matmul %1, %2, %cst {dimension_numbers = #tpu.dot_dimension_numbers<[1], [0], [0], [1], [0, 0, 1, 1], [], []>} : vector<8x32xbf16>, vector<32x256xbf16>, vector<8x256xf32> -> vector<8x256xf32>
    %c0_3 = arith.constant 0 : index
    %c0_4 = arith.constant 0 : index
    %4 = vector.load %arg3[%c0_3, %c0_4] : memref<1x256xf32, #tpu.memory_space<vmem>>, vector<1x256xf32>
    %5 = vector.broadcast %4 : vector<1x256xf32> to vector<8x256xf32>
    %6 = arith.addf %3, %5 : vector<8x256xf32>
    %cst_5 = arith.constant 0.000000e+00 : f32
    %7 = vector.broadcast %cst_5 : f32 to vector<8x256xf32>
    %8 = arith.maximumf %6, %7 : vector<8x256xf32>
    %9 = arith.truncf %8 : vector<8x256xf32> to vector<8x256xbf16>
    %c0_6 = arith.constant 0 : index
    %c0_7 = arith.constant 0 : index
    %10 = vector.load %arg4[%c0_6, %c0_7] : memref<256x128xbf16, #tpu.memory_space<vmem>>, vector<256x128xbf16>
    %cst_8 = arith.constant dense<0.000000e+00> : vector<8x128xf32>
    %11 = tpu.matmul %9, %10, %cst_8 {dimension_numbers = #tpu.dot_dimension_numbers<[1], [0], [0], [1], [0, 0, 1, 1], [], []>} : vector<8x256xbf16>, vector<256x128xbf16>, vector<8x128xf32> -> vector<8x128xf32>
    %c0_9 = arith.constant 0 : index
    %c0_10 = arith.constant 0 : index
    %12 = vector.load %arg5[%c0_9, %c0_10] : memref<1x128xf32, #tpu.memory_space<vmem>>, vector<1x128xf32>
    %13 = vector.broadcast %12 : vector<1x128xf32> to vector<8x128xf32>
    %14 = arith.addf %11, %13 : vector<8x128xf32>
    %cst_11 = arith.constant 0.000000e+00 : f32
    %15 = vector.broadcast %cst_11 : f32 to vector<8x128xf32>
    %16 = arith.maximumf %14, %15 : vector<8x128xf32>
    %17 = arith.truncf %16 : vector<8x128xf32> to vector<8x128xbf16>
    %c0_12 = arith.constant 0 : index
    %c0_13 = arith.constant 0 : index
    %18 = vector.load %arg6[%c0_12, %c0_13] : memref<128x128xbf16, #tpu.memory_space<vmem>>, vector<128x128xbf16>
    %cst_14 = arith.constant dense<0.000000e+00> : vector<8x128xf32>
    %19 = tpu.matmul %17, %18, %cst_14 {dimension_numbers = #tpu.dot_dimension_numbers<[1], [0], [0], [1], [0, 0, 1, 1], [], []>} : vector<8x128xbf16>, vector<128x128xbf16>, vector<8x128xf32> -> vector<8x128xf32>
    %c0_15 = arith.constant 0 : index
    %c0_16 = arith.constant 0 : index
    %20 = vector.load %arg7[%c0_15, %c0_16] : memref<1x128xf32, #tpu.memory_space<vmem>>, vector<1x128xf32>
    %21 = vector.broadcast %20 : vector<1x128xf32> to vector<8x128xf32>
    %22 = arith.addf %19, %21 : vector<8x128xf32>
    %cst_17 = arith.constant 0.000000e+00 : f32
    %23 = vector.broadcast %cst_17 : f32 to vector<8x128xf32>
    %24 = arith.maximumf %22, %23 : vector<8x128xf32>
    %25 = arith.truncf %24 : vector<8x128xf32> to vector<8x128xbf16>
    %c0_18 = arith.constant 0 : index
    %c0_19 = arith.constant 0 : index
    %26 = vector.load %arg8[%c0_18, %c0_19] : memref<128x128xbf16, #tpu.memory_space<vmem>>, vector<128x128xbf16>
    %cst_20 = arith.constant dense<0.000000e+00> : vector<8x128xf32>
    %27 = tpu.matmul %25, %26, %cst_20 {dimension_numbers = #tpu.dot_dimension_numbers<[1], [0], [0], [1], [0, 0, 1, 1], [], []>} : vector<8x128xbf16>, vector<128x128xbf16>, vector<8x128xf32> -> vector<8x128xf32>
    %c0_21 = arith.constant 0 : index
    %c0_22 = arith.constant 0 : index
    %28 = vector.load %arg9[%c0_21, %c0_22] : memref<1x128xf32, #tpu.memory_space<vmem>>, vector<1x128xf32>
    %29 = vector.broadcast %28 : vector<1x128xf32> to vector<8x128xf32>
    %30 = arith.addf %27, %29 : vector<8x128xf32>
    %cst_23 = arith.constant 0.000000e+00 : f32
    %31 = vector.broadcast %cst_23 : f32 to vector<8x128xf32>
    %32 = arith.subf %31, %30 : vector<8x128xf32>
    %33 = math.exp %32 : vector<8x128xf32>
    %cst_24 = arith.constant 1.000000e+00 : f32
    %34 = vector.broadcast %cst_24 : f32 to vector<8x128xf32>
    %35 = arith.addf %34, %33 : vector<8x128xf32>
    %36 = tpu.reciprocal %35 {approx = true} : vector<8x128xf32> -> vector<8x128xf32>
    %37 = arith.truncf %36 : vector<8x128xf32> to vector<8x128xbf16>
    %c0_25 = arith.constant 0 : index
    %c0_26 = arith.constant 0 : index
    %38 = vector.load %arg10[%c0_25, %c0_26] : memref<8x128xbf16, #tpu.memory_space<vmem>>, vector<8x128xbf16>
    tpu.vector_store %arg10[%c0_25, %c0_26], %37 {strides = array<i32>} : memref<8x128xbf16, #tpu.memory_space<vmem>>, vector<8x128xbf16>,
    return
  }
  func.func @transform_0(%arg0: i32) -> (i32, i32) {
    %c0_i32 = arith.constant 0 : i32
    %c0_i32_0 = arith.constant 0 : i32
    return %arg0, %c0_i32 : i32, i32
  }
  func.func @transform_1(%arg0: i32) -> (i32, i32) {
    %c0_i32 = arith.constant 0 : i32
    %c0_i32_0 = arith.constant 0 : i32
    %c0_i32_1 = arith.constant 0 : i32
    return %c0_i32, %c0_i32_0 : i32, i32
  }
  func.func @transform_2(%arg0: i32) -> (i32, i32) {
    %c0_i32 = arith.constant 0 : i32
    %c0_i32_0 = arith.constant 0 : i32
    %c0_i32_1 = arith.constant 0 : i32
    return %c0_i32, %c0_i32_0 : i32, i32
  }
  func.func @transform_3(%arg0: i32) -> (i32, i32) {
    %c0_i32 = arith.constant 0 : i32
    %c0_i32_0 = arith.constant 0 : i32
    %c0_i32_1 = arith.constant 0 : i32
    return %c0_i32, %c0_i32_0 : i32, i32
  }
  func.func @transform_4(%arg0: i32) -> (i32, i32) {
    %c0_i32 = arith.constant 0 : i32
    %c0_i32_0 = arith.constant 0 : i32
    %c0_i32_1 = arith.constant 0 : i32
    return %c0_i32, %c0_i32_0 : i32, i32
  }
  func.func @transform_5(%arg0: i32) -> (i32, i32) {
    %c0_i32 = arith.constant 0 : i32
    %c0_i32_0 = arith.constant 0 : i32
    %c0_i32_1 = arith.constant 0 : i32
    return %c0_i32, %c0_i32_0 : i32, i32
  }
  func.func @transform_6(%arg0: i32) -> (i32, i32) {
    %c0_i32 = arith.constant 0 : i32
    %c0_i32_0 = arith.constant 0 : i32
    %c0_i32_1 = arith.constant 0 : i32
    return %c0_i32, %c0_i32_0 : i32, i32
  }
  func.func @transform_7(%arg0: i32) -> (i32, i32) {
    %c0_i32 = arith.constant 0 : i32
    %c0_i32_0 = arith.constant 0 : i32
    %c0_i32_1 = arith.constant 0 : i32
    return %c0_i32, %c0_i32_0 : i32, i32
  }
  func.func @transform_8(%arg0: i32) -> (i32, i32) {
    %c0_i32 = arith.constant 0 : i32
    %c0_i32_0 = arith.constant 0 : i32
    %c0_i32_1 = arith.constant 0 : i32
    return %c0_i32, %c0_i32_0 : i32, i32
  }
  func.func @transform_9(%arg0: i32) -> (i32, i32) {
    %c0_i32 = arith.constant 0 : i32
    %c0_i32_0 = arith.constant 0 : i32
    return %arg0, %c0_i32 : i32, i32
  }
}

</mosaic_0001>

<llo_original>
// kernel: tpu_custom_call.1
$region0: #{tpu_custom_call.1}
  #allocation0 [shape = 'u32[]', space=smem, size = 0x4, offset = 0x4, fixed_abs, tag = 'smem constant byte address 0x4 - core index']
  #allocation1 [shape = 'u32[72,128]{1,0:T(1,128)}', space=vmem, size = 0x9000, scoped, tag = 'internal scratch']
  %s0 = inlined_call_operand.hbm [shape: f32[8,32], index: 0, kind: input, shape index: {}]
  %s1 = inlined_call_operand.hbm [shape: bf16[32,256], index: 1, kind: input, shape index: {}]
  %s2 = inlined_call_operand.hbm [shape: f32[1,256], index: 2, kind: input, shape index: {}]
  %s3 = inlined_call_operand.hbm [shape: bf16[256,128], index: 3, kind: input, shape index: {}]
  %s4 = inlined_call_operand.vmem [shape: f32[1,128], index: 4, kind: input, shape index: {}]
  %s5 = inlined_call_operand.hbm [shape: bf16[128,128], index: 5, kind: input, shape index: {}]
  %s6 = inlined_call_operand.vmem [shape: f32[1,128], index: 6, kind: input, shape index: {}]
  %s7 = inlined_call_operand.hbm [shape: bf16[128,128], index: 7, kind: input, shape index: {}]
  %s8 = inlined_call_operand.vmem [shape: f32[1,128], index: 8, kind: input, shape index: {}]
  %s9 = inlined_call_operand.hbm [shape: bf16[8,128], index: 9, kind: output, shape index: {}]
  %s10 = sld [smem:[#allocation0]]
  $region70: #{tpu_custom_call.1} parent=0
    _
  %s12 = ssub.s32 1, %s10
  %s13 = scalar_select 0, %s12, %s10
  $region1: #{tpu_custom_call.1} parent=0
    #allocation2 [shape = 'u8[4096]{0}', space=vmem, size = 0x1000, scoped, tag = 'input window, operand 0, single buffered']
    #allocation3 [shape = 's32[1]{0}', space=sflag, size = 0x4, scoped, tag = 'scoped memory for tpu_custom_call.1']
    #allocation4 [shape = 's32[1]{0}', space=sflag, size = 0x4, scoped, tag = 'scoped memory for tpu_custom_call.1']
    #allocation5 [shape = 'u8[16384]{0}', space=vmem, size = 0x4000, scoped, tag = 'input window, operand 1, single buffered']
    #allocation6 [shape = 's32[1]{0}', space=sflag, size = 0x4, scoped, tag = 'scoped memory for tpu_custom_call.1']
    #allocation7 [shape = 'u8[1024]{0}', space=vmem, size = 0x400, scoped, tag = 'input window, operand 2, single buffered']
    #allocation8 [shape = 'u8[65536]{0}', space=vmem, size = 0x10000, scoped, tag = 'input window, operand 3, single buffered']
    #allocation9 [shape = 's32[1]{0}', space=sflag, size = 0x4, scoped, tag = 'scoped memory for tpu_custom_call.1']
    #allocation10 [shape = 'u8[32768]{0}', space=vmem, size = 0x8000, scoped, tag = 'input window, operand 5, single buffered']
    #allocation11 [shape = 'u8[32768]{0}', space=vmem, size = 0x8000, scoped, tag = 'input window, operand 7, single buffered']
    #allocation12 [shape = 's32[1]{0}', space=sflag, size = 0x4, scoped, tag = 'scoped memory for tpu_custom_call.1']
    #allocation13 [shape = 'u8[2048]{0}', space=vmem, size = 0x800, scoped, tag = 'output window, operand 0, single buffered']
    %14 = vsyncpa [#allocation3], 0
    %15 = vsyncpa [#allocation6], 0
    %16 = vsyncpa [#allocation9], 0
    %17 = vsyncpa [#allocation12], 0
    %18 = vsyncpa [#allocation4], 0
    // Predicated region
    $region2: #{tpu_custom_call.1} parent=1 // pred_check
      _
    $region3: #{tpu_custom_call.1} parent=1 // pred_check_branch
      %20 = sbr.rel (0) target = $region5
    $region4: #{tpu_custom_call.1} parent=1 // pred_region
      %22 = vsyncadd [#allocation3], 0
      %s24 = sshll.u32 %s0, 4
      %s25 = int_to_ptr.hbm [resolvable:$true] %s24
      %s26 = sshll.u32 [#allocation2], 4
      %s27 = int_to_ptr.vmem [resolvable:$true] %s26
      %29 = dma.hbm_to_vmem [thread:$0]  %s25, 128, %s27, [#allocation3]
    $region5: #{tpu_custom_call.1} parent=1 // pred_fallthru
      _
    // Predicated region
    $region6: #{tpu_custom_call.1} parent=1 // pred_check
      _
    $region7: #{tpu_custom_call.1} parent=1 // pred_check_branch
      %31 = sbr.rel (0) target = $region9
    $region8: #{tpu_custom_call.1} parent=1 // pred_region
      %33 = vsyncadd [#allocation6], 0
      %s34 = sshll.u32 %s1, 4
      %s35 = int_to_ptr.hbm [resolvable:$true] %s34
      %s36 = sshll.u32 [#allocation5], 4
      %s37 = int_to_ptr.vmem [resolvable:$true] %s36
      %42 = dma.hbm_to_vmem [thread:$0]  %s35, 512, %s37, [#allocation6], 128, 128, 8
    $region9: #{tpu_custom_call.1} parent=1 // pred_fallthru
      _
    // Predicated region
    $region10: #{tpu_custom_call.1} parent=1 // pred_check
      _
    $region11: #{tpu_custom_call.1} parent=1 // pred_check_branch
      %44 = sbr.rel (0) target = $region13
    $region12: #{tpu_custom_call.1} parent=1 // pred_region
      %46 = vsyncadd [#allocation6], 0
      %s48 = sshll.u32 %s2, 4
      %s49 = int_to_ptr.hbm [resolvable:$true] %s48
      %s50 = sshll.u32 [#allocation7], 4
      %s51 = int_to_ptr.vmem [resolvable:$true] %s50
      %53 = dma.hbm_to_vmem [thread:$0]  %s49, 32, %s51, [#allocation6]
    $region13: #{tpu_custom_call.1} parent=1 // pred_fallthru
      _
    // Predicated region
    $region14: #{tpu_custom_call.1} parent=1 // pred_check
      _
    $region15: #{tpu_custom_call.1} parent=1 // pred_check_branch
      %55 = sbr.rel (0) target = $region17
    $region16: #{tpu_custom_call.1} parent=1 // pred_region
      %57 = vsyncadd [#allocation9], 0
      %s58 = sshll.u32 %s3, 4
      %s59 = int_to_ptr.hbm [resolvable:$true] %s58
      %s60 = sshll.u32 [#allocation8], 4
      %s61 = int_to_ptr.vmem [resolvable:$true] %s60
      %66 = dma.hbm_to_vmem [thread:$0]  %s59, 2048, %s61, [#allocation9], 64, 64, 4
    $region17: #{tpu_custom_call.1} parent=1 // pred_fallthru
      _
    // Predicated region
    $region18: #{tpu_custom_call.1} parent=1 // pred_check
      _
    $region19: #{tpu_custom_call.1} parent=1 // pred_check_branch
      %68 = sbr.rel (0) target = $region21
    $region20: #{tpu_custom_call.1} parent=1 // pred_region
      _
    $region21: #{tpu_custom_call.1} parent=1 // pred_fallthru
      _
    // Predicated region
    $region22: #{tpu_custom_call.1} parent=1 // pred_check
      _
    $region23: #{tpu_custom_call.1} parent=1 // pred_check_branch
      %70 = sbr.rel (0) target = $region25
    $region24: #{tpu_custom_call.1} parent=1 // pred_region
      %72 = vsyncadd [#allocation9], 0
      %s73 = sshll.u32 %s5, 4
      %s74 = int_to_ptr.hbm [resolvable:$true] %s73
      %s75 = sshll.u32 [#allocation10], 4
      %s76 = int_to_ptr.vmem [resolvable:$true] %s75
      %81 = dma.hbm_to_vmem [thread:$0]  %s74, 1024, %s76, [#allocation9], 64, 64, 4
    $region25: #{tpu_custom_call.1} parent=1 // pred_fallthru
      _
    // Predicated region
    $region26: #{tpu_custom_call.1} parent=1 // pred_check
      _
    $region27: #{tpu_custom_call.1} parent=1 // pred_check_branch
      %83 = sbr.rel (0) target = $region29
    $region28: #{tpu_custom_call.1} parent=1 // pred_region
      _
    $region29: #{tpu_custom_call.1} parent=1 // pred_fallthru
      _
    // Predicated region
    $region30: #{tpu_custom_call.1} parent=1 // pred_check
      _
    $region31: #{tpu_custom_call.1} parent=1 // pred_check_branch
      %85 = sbr.rel (0) target = $region33
    $region32: #{tpu_custom_call.1} parent=1 // pred_region
      %87 = vsyncadd [#allocation12], 0
      %s88 = sshll.u32 %s7, 4
      %s89 = int_to_ptr.hbm [resolvable:$true] %s88
      %s90 = sshll.u32 [#allocation11], 4
      %s91 = int_to_ptr.vmem [resolvable:$true] %s90
      %96 = dma.hbm_to_vmem [thread:$0]  %s89, 1024, %s91, [#allocation12], 64, 64, 4
    $region33: #{tpu_custom_call.1} parent=1 // pred_fallthru
      _
    // Predicated region
    $region34: #{tpu_custom_call.1} parent=1 // pred_check
      _
    $region35: #{tpu_custom_call.1} parent=1 // pred_check_branch
      %98 = sbr.rel (0) target = $region37
    $region36: #{tpu_custom_call.1} parent=1 // pred_region
      _
    $region37: #{tpu_custom_call.1} parent=1 // pred_fallthru
      _
    // Predicated region
    $region38: #{tpu_custom_call.1} parent=1 // pred_check
      _
    $region39: #{tpu_custom_call.1} parent=1 // pred_check_branch
      %100 = sbr.rel (0) target = $region41
    $region40: #{tpu_custom_call.1} parent=1 // pred_region
      %102 = dma.done [#allocation3], 128
    $region41: #{tpu_custom_call.1} parent=1 // pred_fallthru
      _
    // Predicated region
    $region42: #{tpu_custom_call.1} parent=1 // pred_check
      _
    $region43: #{tpu_custom_call.1} parent=1 // pred_check_branch
      %104 = sbr.rel (0) target = $region45
    $region44: #{tpu_custom_call.1} parent=1 // pred_region
      %106 = dma.done [#allocation6], 512
    $region45: #{tpu_custom_call.1} parent=1 // pred_fallthru
      _
    // Predicated region
    $region46: #{tpu_custom_call.1} parent=1 // pred_check
      _
    $region47: #{tpu_custom_call.1} parent=1 // pred_check_branch
      %108 = sbr.rel (0) target = $region49
    $region48: #{tpu_custom_call.1} parent=1 // pred_region
      %110 = dma.done [#allocation6], 32
    $region49: #{tpu_custom_call.1} parent=1 // pred_fallthru
      _
    // Predicated region
    $region50: #{tpu_custom_call.1} parent=1 // pred_check
      _
    $region51: #{tpu_custom_call.1} parent=1 // pred_check_branch
      %112 = sbr.rel (0) target = $region53
    $region52: #{tpu_custom_call.1} parent=1 // pred_region
      %114 = dma.done [#allocation9], 2048
    $region53: #{tpu_custom_call.1} parent=1 // pred_fallthru
      _
    // Predicated region
    $region54: #{tpu_custom_call.1} parent=1 // pred_check
      _
    $region55: #{tpu_custom_call.1} parent=1 // pred_check_branch
      %116 = sbr.rel (0) target = $region57
    $region56: #{tpu_custom_call.1} parent=1 // pred_region
      %118 = dma.done [#allocation9], 1024
    $region57: #{tpu_custom_call.1} parent=1 // pred_fallthru
      _
    // Predicated region
    $region58: #{tpu_custom_call.1} parent=1 // pred_check
      _
    $region59: #{tpu_custom_call.1} parent=1 // pred_check_branch
      %120 = sbr.rel (0) target = $region61
    $region60: #{tpu_custom_call.1} parent=1 // pred_region
      %122 = dma.done [#allocation12], 1024
    $region61: #{tpu_custom_call.1} parent=1 // pred_fallthru
      _
    %v124 = vld [vmem:[#allocation2] sm:$0xff]
    %v125 = vpack.c.bf16 %v124, %v124
    %v126 = vld [vmem:[#allocation5] sm:$0xff]
    %v127 = vld [vmem:[#allocation5 + $0x8] sm:$0xff]
    %v128 = vld [vmem:[#allocation5 + $0x10] sm:$0xff]
    %v129 = vld [vmem:[#allocation5 + $0x18] sm:$0xff]
    %v130 = vld [vmem:[#allocation7] sm:$0x3]
    %v132 = vperm.slane %v130, 0
    %v133 = vperm.slane %v130, 1
    %v140 = vunpack.c.l.b16 %v126
    %v141 = vunpack.c.h.b16 %v126
    %v142 = vunpack.c.l.b16 %v127
    %v143 = vunpack.c.h.b16 %v127
    %v144 = vunpack.c.l.b16 %v128
    %v145 = vunpack.c.h.b16 %v128
    %v146 = vunpack.c.l.b16 %v129
    %v147 = vunpack.c.h.b16 %v129
    %v148 = vpack.c.b16 %v142, %v140
    %v149 = vpack.c.b16 %v143, %v141
    %v150 = vpack.c.b16 %v146, %v144
    %v151 = vpack.c.b16 %v147, %v145
    %vm156 = vcmask 261120
    %v158 = vsel %vm156, %v125, 0
    %160 = vmatpush.bf16.msra.mxu0 0
    %161 = vmatpush.bf16.msra.mxu0 0
    %162 = vmatpush.bf16.msra.mxu0 0
    %163 = vmatpush.bf16.msra.mxu0 0
    %164 = vmatpush.bf16.msra.mxu0 0
    %165 = vmatpush.bf16.msra.mxu0 0
    %166 = vmatpush.bf16.msra.mxu0 %v150
    %167 = vmatpush.bf16.msra.mxu0 %v148
    %168 = vmatmul.bf16.gmra.mxu0 %v158
    %v169 = vpop.f32.mrf.mxu0
    %v170 = vadd.f32 %v132, %v169
    %v171 = vpop.f32.mrf.mxu0
    %172 = vdwg.mxu0
    %173 = vmatpush.bf16.msra.mxu0 0
    %174 = vmatpush.bf16.msra.mxu0 0
    %175 = vmatpush.bf16.msra.mxu0 0
    %176 = vmatpush.bf16.msra.mxu0 0
    %177 = vmatpush.bf16.msra.mxu0 0
    %178 = vmatpush.bf16.msra.mxu0 0
    %179 = vmatpush.bf16.msra.mxu0 %v151
    %180 = vmatpush.bf16.msra.mxu0 %v149
    %181 = vmatmul.bf16.gmra.mxu0 %v158
    %v182 = vpop.f32.mrf.mxu0
    %v183 = vadd.f32 %v133, %v182
    %v184 = vpop.f32.mrf.mxu0
    %185 = vdwg.mxu0
    %v186 = vmax.f32 %v170, 0.0
    %v187 = vmax.f32 %v183, 0.0
    %v188 = vpack.c.bf16 %v186, %v186
    %v189 = vpack.c.bf16 %v187, %v187
    %v190 = vld [vmem:[#allocation8] sm:$0xf]
    %v191 = vld [vmem:[#allocation8 + $0x4] sm:$0xf]
    %v192 = vld [vmem:[#allocation8 + $0x8] sm:$0xf]
    %v193 = vld [vmem:[#allocation8 + $0xc] sm:$0xf]
    %v194 = vld [vmem:[#allocation8 + $0x10] sm:$0xf]
    %v195 = vld [vmem:[#allocation8 + $0x14] sm:$0xf]
    %v196 = vld [vmem:[#allocation8 + $0x18] sm:$0xf]
    %v197 = vld [vmem:[#allocation8 + $0x1c] sm:$0xf]
    %v198 = vld [vmem:[#allocation8 + $0x20] sm:$0xf]
    %v199 = vld [vmem:[#allocation8 + $0x24] sm:$0xf]
    %v200 = vld [vmem:[#allocation8 + $0x28] sm:$0xf]
    %v201 = vld [vmem:[#allocation8 + $0x2c] sm:$0xf]
    %v202 = vld [vmem:[#allocation8 + $0x30] sm:$0xf]
    %v203 = vld [vmem:[#allocation8 + $0x34] sm:$0xf]
    %v204 = vld [vmem:[#allocation8 + $0x38] sm:$0xf]
    %v205 = vld [vmem:[#allocation8 + $0x3c] sm:$0xf]
    %v206 = vld [vmem:[#allocation8 + $0x40] sm:$0xf]
    %v207 = vld [vmem:[#allocation8 + $0x44] sm:$0xf]
    %v208 = vld [vmem:[#allocation8 + $0x48] sm:$0xf]
    %v209 = vld [vmem:[#allocation8 + $0x4c] sm:$0xf]
    %v210 = vld [vmem:[#allocation8 + $0x50] sm:$0xf]
    %v211 = vld [vmem:[#allocation8 + $0x54] sm:$0xf]
    %v212 = vld [vmem:[#allocation8 + $0x58] sm:$0xf]
    %v213 = vld [vmem:[#allocation8 + $0x5c] sm:$0xf]
    %v214 = vld [vmem:[#allocation8 + $0x60] sm:$0xf]
    %v215 = vld [vmem:[#allocation8 + $0x64] sm:$0xf]
    %v216 = vld [vmem:[#allocation8 + $0x68] sm:$0xf]
    %v217 = vld [vmem:[#allocation8 + $0x6c] sm:$0xf]
    %v218 = vld [vmem:[#allocation8 + $0x70] sm:$0xf]
    %v219 = vld [vmem:[#allocation8 + $0x74] sm:$0xf]
    %v220 = vld [vmem:[#allocation8 + $0x78] sm:$0xf]
    %v221 = vld [vmem:[#allocation8 + $0x7c] sm:$0xf]
    %v222 = vld [vmem:[%s4] sm:$0x1]
    %v224 = vperm.slane %v222, 0
    %v258 = vunpack.c.l.b16 %v190
    %v259 = vunpack.c.l.b16 %v191
    %v260 = vunpack.c.l.b16 %v192
    %v261 = vunpack.c.l.b16 %v193
    %v262 = vunpack.c.l.b16 %v194
    %v263 = vunpack.c.l.b16 %v195
    %v264 = vunpack.c.l.b16 %v196
    %v265 = vunpack.c.l.b16 %v197
    %v266 = vunpack.c.l.b16 %v198
    %v267 = vunpack.c.l.b16 %v199
    %v268 = vunpack.c.l.b16 %v200
    %v269 = vunpack.c.l.b16 %v201
    %v270 = vunpack.c.l.b16 %v202
    %v271 = vunpack.c.l.b16 %v203
    %v272 = vunpack.c.l.b16 %v204
    %v273 = vunpack.c.l.b16 %v205
    %v274 = vunpack.c.l.b16 %v206
    %v275 = vunpack.c.l.b16 %v207
    %v276 = vunpack.c.l.b16 %v208
    %v277 = vunpack.c.l.b16 %v209
    %v278 = vunpack.c.l.b16 %v210
    %v279 = vunpack.c.l.b16 %v211
    %v280 = vunpack.c.l.b16 %v212
    %v281 = vunpack.c.l.b16 %v213
    %v282 = vunpack.c.l.b16 %v214
    %v283 = vunpack.c.l.b16 %v215
    %v284 = vunpack.c.l.b16 %v216
    %v285 = vunpack.c.l.b16 %v217
    %v286 = vunpack.c.l.b16 %v218
    %v287 = vunpack.c.l.b16 %v219
    %v288 = vunpack.c.l.b16 %v220
    %v289 = vunpack.c.l.b16 %v221
    %v290 = vpack.c.b16 %v259, %v258
    %v291 = vpack.c.b16 %v261, %v260
    %v292 = vpack.c.b16 %v263, %v262
    %v293 = vpack.c.b16 %v265, %v264
    %v294 = vpack.c.b16 %v267, %v266
    %v295 = vpack.c.b16 %v269, %v268
    %v296 = vpack.c.b16 %v271, %v270
    %v297 = vpack.c.b16 %v273, %v272
    %v298 = vpack.c.b16 %v275, %v274
    %v299 = vpack.c.b16 %v277, %v276
    %v300 = vpack.c.b16 %v279, %v278
    %v301 = vpack.c.b16 %v281, %v280
    %v302 = vpack.c.b16 %v283, %v282
    %v303 = vpack.c.b16 %v285, %v284
    %v304 = vpack.c.b16 %v287, %v286
    %v305 = vpack.c.b16 %v289, %v288
    %322 = vmatpush.bf16.msra.mxu0 %v297
    %323 = vmatpush.bf16.msra.mxu0 %v296
    %324 = vmatpush.bf16.msra.mxu0 %v295
    %325 = vmatpush.bf16.msra.mxu0 %v294
    %326 = vmatpush.bf16.msra.mxu0 %v293
    %327 = vmatpush.bf16.msra.mxu0 %v292
    %328 = vmatpush.bf16.msra.mxu0 %v291
    %329 = vmatpush.bf16.msra.mxu0 %v290
    %330 = vmatmul.bf16.gmra.mxu0 %v188
    %v331 = vpop.f32.mrf.mxu0
    %v332 = vadd.f32 %v224, %v331
    %v333 = vpop.f32.mrf.mxu0
    %334 = vdwg.mxu0
    %335 = vmatpush.bf16.msra.mxu0 %v305
    %336 = vmatpush.bf16.msra.mxu0 %v304
    %337 = vmatpush.bf16.msra.mxu0 %v303
    %338 = vmatpush.bf16.msra.mxu0 %v302
    %339 = vmatpush.bf16.msra.mxu0 %v301
    %340 = vmatpush.bf16.msra.mxu0 %v300
    %341 = vmatpush.bf16.msra.mxu0 %v299
    %342 = vmatpush.bf16.msra.mxu0 %v298
    %343 = vmatmul.bf16.gmra.mxu0 %v189
    %v344 = vpop.f32.mrf.mxu0
    %v345 = vadd.f32 %v332, %v344
    %v346 = vpop.f32.mrf.mxu0
    %347 = vdwg.mxu0
    %v348 = vmax.f32 %v345, 0.0
    %v349 = vpack.c.bf16 %v348, %v348
    %v350 = vld [vmem:[#allocation10] sm:$0xf]
    %v351 = vld [vmem:[#allocation10 + $0x4] sm:$0xf]
    %v352 = vld [vmem:[#allocation10 + $0x8] sm:$0xf]
    %v353 = vld [vmem:[#allocation10 + $0xc] sm:$0xf]
    %v354 = vld [vmem:[#allocation10 + $0x10] sm:$0xf]
    %v355 = vld [vmem:[#allocation10 + $0x14] sm:$0xf]
    %v356 = vld [vmem:[#allocation10 + $0x18] sm:$0xf]
    %v357 = vld [vmem:[#allocation10 + $0x1c] sm:$0xf]
    %v358 = vld [vmem:[#allocation10 + $0x20] sm:$0xf]
    %v359 = vld [vmem:[#allocation10 + $0x24] sm:$0xf]
    %v360 = vld [vmem:[#allocation10 + $0x28] sm:$0xf]
    %v361 = vld [vmem:[#allocation10 + $0x2c] sm:$0xf]
    %v362 = vld [vmem:[#allocation10 + $0x30] sm:$0xf]
    %v363 = vld [vmem:[#allocation10 + $0x34] sm:$0xf]
    %v364 = vld [vmem:[#allocation10 + $0x38] sm:$0xf]
    %v365 = vld [vmem:[#allocation10 + $0x3c] sm:$0xf]
    %v366 = vld [vmem:[%s6] sm:$0x1]
    %v368 = vperm.slane %v366, 0
    %v386 = vunpack.c.l.b16 %v350
    %v387 = vunpack.c.l.b16 %v351
    %v388 = vunpack.c.l.b16 %v352
    %v389 = vunpack.c.l.b16 %v353
    %v390 = vunpack.c.l.b16 %v354
    %v391 = vunpack.c.l.b16 %v355
    %v392 = vunpack.c.l.b16 %v356
    %v393 = vunpack.c.l.b16 %v357
    %v394 = vunpack.c.l.b16 %v358
    %v395 = vunpack.c.l.b16 %v359
    %v396 = vunpack.c.l.b16 %v360
    %v397 = vunpack.c.l.b16 %v361
    %v398 = vunpack.c.l.b16 %v362
    %v399 = vunpack.c.l.b16 %v363
    %v400 = vunpack.c.l.b16 %v364
    %v401 = vunpack.c.l.b16 %v365
    %v402 = vpack.c.b16 %v387, %v386
    %v403 = vpack.c.b16 %v389, %v388
    %v404 = vpack.c.b16 %v391, %v390
    %v405 = vpack.c.b16 %v393, %v392
    %v406 = vpack.c.b16 %v395, %v394
    %v407 = vpack.c.b16 %v397, %v396
    %v408 = vpack.c.b16 %v399, %v398
    %v409 = vpack.c.b16 %v401, %v400
    %418 = vmatpush.bf16.msra.mxu0 %v409
    %419 = vmatpush.bf16.msra.mxu0 %v408
    %420 = vmatpush.bf16.msra.mxu0 %v407
    %421 = vmatpush.bf16.msra.mxu0 %v406
    %422 = vmatpush.bf16.msra.mxu0 %v405
    %423 = vmatpush.bf16.msra.mxu0 %v404
    %424 = vmatpush.bf16.msra.mxu0 %v403
    %425 = vmatpush.bf16.msra.mxu0 %v402
    %426 = vmatmul.bf16.gmra.mxu0 %v349
    %v427 = vpop.f32.mrf.mxu0
    %v428 = vadd.f32 %v368, %v427
    %v429 = vpop.f32.mrf.mxu0
    %430 = vdwg.mxu0
    %v431 = vmax.f32 %v428, 0.0
    %v432 = vpack.c.bf16 %v431, %v431
    %v433 = vld [vmem:[#allocation11] sm:$0xf]
    %v434 = vld [vmem:[#allocation11 + $0x4] sm:$0xf]
    %v435 = vld [vmem:[#allocation11 + $0x8] sm:$0xf]
    %v436 = vld [vmem:[#allocation11 + $0xc] sm:$0xf]
    %v437 = vld [vmem:[#allocation11 + $0x10] sm:$0xf]
    %v438 = vld [vmem:[#allocation11 + $0x14] sm:$0xf]
    %v439 = vld [vmem:[#allocation11 + $0x18] sm:$0xf]
    %v440 = vld [vmem:[#allocation11 + $0x1c] sm:$0xf]
    %v441 = vld [vmem:[#allocation11 + $0x20] sm:$0xf]
    %v442 = vld [vmem:[#allocation11 + $0x24] sm:$0xf]
    %v443 = vld [vmem:[#allocation11 + $0x28] sm:$0xf]
    %v444 = vld [vmem:[#allocation11 + $0x2c] sm:$0xf]
    %v445 = vld [vmem:[#allocation11 + $0x30] sm:$0xf]
    %v446 = vld [vmem:[#allocation11 + $0x34] sm:$0xf]
    %v447 = vld [vmem:[#allocation11 + $0x38] sm:$0xf]
    %v448 = vld [vmem:[#allocation11 + $0x3c] sm:$0xf]
    %v449 = vld [vmem:[%s8] sm:$0x1]
    %v451 = vperm.slane %v449, 0
    %v469 = vunpack.c.l.b16 %v433
    %v470 = vunpack.c.l.b16 %v434
    %v471 = vunpack.c.l.b16 %v435
    %v472 = vunpack.c.l.b16 %v436
    %v473 = vunpack.c.l.b16 %v437
    %v474 = vunpack.c.l.b16 %v438
    %v475 = vunpack.c.l.b16 %v439
    %v476 = vunpack.c.l.b16 %v440
    %v477 = vunpack.c.l.b16 %v441
    %v478 = vunpack.c.l.b16 %v442
    %v479 = vunpack.c.l.b16 %v443
    %v480 = vunpack.c.l.b16 %v444
    %v481 = vunpack.c.l.b16 %v445
    %v482 = vunpack.c.l.b16 %v446
    %v483 = vunpack.c.l.b16 %v447
    %v484 = vunpack.c.l.b16 %v448
    %v485 = vpack.c.b16 %v470, %v469
    %v486 = vpack.c.b16 %v472, %v471
    %v487 = vpack.c.b16 %v474, %v473
    %v488 = vpack.c.b16 %v476, %v475
    %v489 = vpack.c.b16 %v478, %v477
    %v490 = vpack.c.b16 %v480, %v479
    %v491 = vpack.c.b16 %v482, %v481
    %v492 = vpack.c.b16 %v484, %v483
    %501 = vmatpush.bf16.msra.mxu0 %v492
    %502 = vmatpush.bf16.msra.mxu0 %v491
    %503 = vmatpush.bf16.msra.mxu0 %v490
    %504 = vmatpush.bf16.msra.mxu0 %v489
    %505 = vmatpush.bf16.msra.mxu0 %v488
    %506 = vmatpush.bf16.msra.mxu0 %v487
    %507 = vmatpush.bf16.msra.mxu0 %v486
    %508 = vmatpush.bf16.msra.mxu0 %v485
    %509 = vmatmul.bf16.gmra.mxu0 %v432
    %v510 = vpop.f32.mrf.mxu0
    %v511 = vadd.f32 %v451, %v510
    %v512 = vpop.f32.mrf.mxu0
    %513 = vdwg.mxu0
    %v514 = vsub.f32 0.0, %v511
    %v515 = vmul.f32 %v514, 1.442695
    %v516 = vpow.pop %v515
    %v517 = vadd.f32 %v516, 1.0
    %v518 = vrcp.pop %v517
    %v519 = vpack.c.bf16 %v518, %v518
    %520 = vst [vmem:[#allocation13] sm:$0xf] %v519
    // Predicated region
    $region62: #{tpu_custom_call.1} parent=1 // pred_check
      _
    $region63: #{tpu_custom_call.1} parent=1 // pred_check_branch
      %522 = sbr.rel (0) target = $region65
    $region64: #{tpu_custom_call.1} parent=1 // pred_region
      %524 = vsyncadd [#allocation4], 0
      %s526 = sshll.u32 [#allocation13], 4
      %s527 = int_to_ptr.vmem [resolvable:$true] %s526
      %s528 = sshll.u32 %s9, 4
      %s529 = int_to_ptr.hbm [resolvable:$true] %s528
      %531 = dma.vmem_to_hbm [thread:$0]  %s527, 64, %s529, [#allocation4]
    $region65: #{tpu_custom_call.1} parent=1 // pred_fallthru
      _
    // Predicated region
    $region66: #{tpu_custom_call.1} parent=1 // pred_check
      _
    $region67: #{tpu_custom_call.1} parent=1 // pred_check_branch
      %533 = sbr.rel (0) target = $region69
    $region68: #{tpu_custom_call.1} parent=1 // pred_region
      %535 = dma.done [#allocation4], 64
    $region69: #{tpu_custom_call.1} parent=1 // pred_fallthru
      _
    %536 = vsyncpa [#allocation3], 1
    %537 = vsyncpa [#allocation6], 1
    %538 = vsyncpa [#allocation9], 1
    %539 = vsyncpa [#allocation12], 1
    %540 = vsyncpa [#allocation4], 1

</llo_original>
